<compile_context>
chip_gen: v5e
topology: v5e:2x2
jax: 0.10.0
libtpu: 0.0.40
codegen_flags: <defaults>
</compile_context>

<pallas_src>
import math
import functools
from typing import NamedTuple

import jax
import jax.numpy as jnp
from jax.experimental import pallas as pl
from jax.experimental.pallas import tpu as pltpu

LANE = 128          # keep H / C_out lane-dense (multiples of 128)
SUBLANE_BF16 = 16   # bf16 sublane packing: token tile rows multiple of 16
NEG_SLOPE = 0.01    # nn.LeakyReLU default negative_slope


def _round_up(x, m):
    return ((x + m - 1) // m) * m


def _pick_tm(T, tm_req):
    """Token tile size: sublane aligned, clamped to T, >=2 grid steps if possible."""
    tm = min(_round_up(tm_req, SUBLANE_BF16), _round_up(T, SUBLANE_BF16))
    tm = max(SUBLANE_BF16, tm)
    # v7x megacore: the single "parallel" token axis is what shards work across
    # the two TensorCores, so prefer >= 2 grid steps when there is enough work.
    if pl.cdiv(T, tm) < 2 and T > SUBLANE_BF16:
        tm = max(SUBLANE_BF16, _round_up(pl.cdiv(T, 2), SUBLANE_BF16))
    return tm


def _vmem_limit_bytes():
    """Per-generation VMEM budget with headroom; None -> let the default apply."""
    try:
        cap = pltpu.get_tpu_info().vmem_capacity_bytes
        return (int(cap) * 3) // 4   # ~48 MiB on v7x, ~96 MiB on v5e/v6e
    except Exception:
        return None


class MlpParams(NamedTuple):
    """Prepacked, lane-padded, bf16 weights (build once, reuse every forward)."""
    w1_t: jax.Array   # [C_in,  H_p]     bf16   (fc1.weight transposed)
    b1: jax.Array     # [1,     H_p]     f32
    w2_t: jax.Array   # [H_p,   C_out_p] bf16   (fc2.weight transposed)
    b2: jax.Array     # [1,     C_out_p] f32


def prepack_mlp_params(w1, b1, w2, b2):
    """One-time repack of PyTorch-layout params.

    w1: [H, C_in], b1: [H], w2: [C_out, H], b2: [C_out].
    Zero padding of H / C_out is exact: padded columns of W1^T give h == 0
    after the zero bias, LeakyReLU(0) == 0, and padded rows of W2^T are zero,
    so padded channels contribute nothing.
    """
    H, C_in = w1.shape
    C_out = w2.shape[0]
    H_p = _round_up(H, LANE)
    C_out_p = _round_up(C_out, LANE)

    w1_t = jnp.zeros((C_in, H_p), jnp.bfloat16).at[:, :H].set(
        w1.T.astype(jnp.bfloat16))
    b1_p = jnp.zeros((1, H_p), jnp.float32).at[0, :H].set(b1.astype(jnp.float32))
    w2_t = jnp.zeros((H_p, C_out_p), jnp.bfloat16).at[:H, :C_out].set(
        w2.T.astype(jnp.bfloat16))
    b2_p = jnp.zeros((1, C_out_p), jnp.float32).at[0, :C_out].set(
        b2.astype(jnp.float32))
    return MlpParams(w1_t, b1_p, w2_t, b2_p)


def mlp_kernel(x_ref, w1_ref, b1_ref, w2_ref, b2_ref, o_ref):
    # fc1: cast x to bf16 in-kernel (VPU), bf16 MXU operands, f32 accumulation.
    x = x_ref[...].astype(jnp.bfloat16)
    h = jnp.dot(x, w1_ref[...], preferred_element_type=jnp.float32)
    h = h + b1_ref[...]                       # [1, H_p] broadcasts over rows (f32)
    h = jnp.where(h > 0, h, NEG_SLOPE * h)    # LeakyReLU in f32 on the VPU
    # dropout p=0.0 -> identity (skipped)
    # fc2: re-cast activation to bf16 for the MXU, accumulate in f32.
    o = jnp.dot(h.astype(jnp.bfloat16), w2_ref[...],
                preferred_element_type=jnp.float32)
    o = o + b2_ref[...]                       # [1, C_out_p]
    o_ref[...] = o.astype(o_ref.dtype)


@functools.partial(jax.jit, static_argnames=("c_out", "tm", "out_dtype"))
def mlp_forward(x, params, *, c_out, tm=256, out_dtype=jnp.bfloat16):
    """Fused MLP forward.

    x      : [..., C_in] float32 (arbitrary leading dims, flattened to tokens)
    params : MlpParams from prepack_mlp_params
    c_out  : original (unpadded) output channel count
    Returns [..., c_out] in out_dtype (f32 accumulation internally).
    """
    w1_t, b1_p, w2_t, b2_p = params
    orig_lead = x.shape[:-1]
    C_in = x.shape[-1]
    H_p = w1_t.shape[1]
    C_out_p = w2_t.shape[1]
    T = int(math.prod(orig_lead)) if orig_lead else 1

    x_tok = x.reshape(T, C_in)          # metadata-only under jit
    tm_eff = _pick_tm(T, tm)
    grid = (pl.cdiv(T, tm_eff),)

    out_itemsize = jnp.dtype(out_dtype).itemsize
    flops = 2 * T * (C_in * H_p + H_p * C_out_p)
    bytes_accessed = (x_tok.size * x_tok.dtype.itemsize
                      + w1_t.size * 2 + w2_t.size * 2
                      + b1_p.size * 4 + b2_p.size * 4
                      + T * C_out_p * out_itemsize)

    out = pl.pallas_call(
        mlp_kernel,
        out_shape=jax.ShapeDtypeStruct((T, C_out_p), out_dtype),
        grid_spec=pltpu.PrefetchScalarGridSpec(
            num_scalar_prefetch=0,
            grid=grid,
            in_specs=[
                pl.BlockSpec((tm_eff, C_in), lambda i: (i, 0)),    # x tile (streams)
                pl.BlockSpec((C_in, H_p), lambda i: (0, 0)),       # W1^T (resident)
                pl.BlockSpec((1, H_p), lambda i: (0, 0)),          # b1
                pl.BlockSpec((H_p, C_out_p), lambda i: (0, 0)),    # W2^T (resident)
                pl.BlockSpec((1, C_out_p), lambda i: (0, 0)),      # b2
            ],
            out_specs=pl.BlockSpec((tm_eff, C_out_p), lambda i: (i, 0)),
        ),
        compiler_params=pltpu.CompilerParams(
            dimension_semantics=("parallel",),
            vmem_limit_bytes=_vmem_limit_bytes(),
        ),
        cost_estimate=pl.CostEstimate(
            flops=flops, transcendentals=0, bytes_accessed=bytes_accessed),
    )(x_tok, w1_t, b1_p, w2_t, b2_p)

    # Strip channel padding and restore leading dims (fused under jit).
    return out[:, :c_out].reshape(*orig_lead, c_out)


def kaiming_normal(key, shape, fan_in):
    # PyTorch kaiming_normal_(mode='fan_in', nonlinearity='leaky_relu', a=0):
    # gain = sqrt(2), std = gain / sqrt(fan_in)
    std = math.sqrt(2.0) / math.sqrt(fan_in)
    return std * jax.random.normal(key, shape, dtype=jnp.float32)


def mlp_reference_bf16(x, w1, b1, w2, b2):
    """Reference with the same bf16 operand quantization as the kernel."""
    lead = x.shape[:-1]
    xt = x.reshape(-1, x.shape[-1]).astype(jnp.bfloat16)
    h = jnp.dot(xt, w1.T.astype(jnp.bfloat16),
                preferred_element_type=jnp.float32) + b1
    h = jnp.where(h > 0, h, NEG_SLOPE * h)
    o = jnp.dot(h.astype(jnp.bfloat16), w2.T.astype(jnp.bfloat16),
                preferred_element_type=jnp.float32) + b2
    return o.reshape(*lead, w2.shape[0])


def mlp_reference_f32(x, w1, b1, w2, b2):
    lead = x.shape[:-1]
    xt = x.reshape(-1, x.shape[-1])
    h = xt @ w1.T + b1
    h = jnp.where(h > 0, h, NEG_SLOPE * h)
    o = h @ w2.T + b2
    return o.reshape(*lead, w2.shape[0])


if __name__ == "__main__":
    # Small shapes consistent with the module's forward: tokens [B, N, C_in].
    B, N, C_in = 2, 128, 32
    H, C_out = 64, 32

    key = jax.random.PRNGKey(0)
    kx, k1, k2 = jax.random.split(key, 3)

    x = jax.random.normal(kx, (B, N, C_in), dtype=jnp.float32)

    # fc1.weight: [H, C_in], fc2.weight: [C_out, H]; biases zero-initialized.
    w1 = kaiming_normal(k1, (H, C_in), fan_in=C_in)
    b1 = jnp.zeros((H,), dtype=jnp.float32)
    w2 = kaiming_normal(k2, (C_out, H), fan_in=H)
    b2 = jnp.zeros((C_out,), dtype=jnp.float32)

    # One-time prepack (hoisted out of the per-call forward path).
    params = prepack_mlp_params(w1, b1, w2, b2)
    jax.block_until_ready(params)

    # T = 256 tokens; tm request 256 is split to 128 -> 2 "parallel" grid steps
    # (both TensorCores busy on v7x, pipelined on v5e/v6e).
    out = mlp_forward(x, params, c_out=C_out, tm=256)
    jax.block_until_ready(out)
    assert out.shape == (B, N, C_out)

    out_f32 = out.astype(jnp.float32)

    # Check against a reference using the identical bf16 operand/output casts.
    ref_bf16 = mlp_reference_bf16(x, w1, b1, w2, b2).astype(
        jnp.bfloat16).astype(jnp.float32)
    assert jnp.allclose(out_f32, ref_bf16, atol=2e-2, rtol=2e-2), \
        "mismatch vs bf16-matched reference"

    # Loose sanity check against the pure-f32 reference (bf16 quantization noise).
    ref_f32 = mlp_reference_f32(x, w1, b1, w2, b2)
    assert float(jnp.max(jnp.abs(out_f32 - ref_f32))) < 0.15, \
        "mismatch vs f32 reference beyond bf16 tolerance"

    print("KERNEL_OK")
</pallas_src>

<mosaic_0001>
module attributes {stable_mosaic.version = 11 : i64} {
  func.func @mlp_kernel(%arg0: i32, %arg1: memref<128x32xf32, #tpu.memory_space<vmem>>, %arg2: memref<32x128xbf16, #tpu.memory_space<vmem>>, %arg3: memref<1x128xf32, #tpu.memory_space<vmem>>, %arg4: memref<128x128xbf16, #tpu.memory_space<vmem>>, %arg5: memref<1x128xf32, #tpu.memory_space<vmem>>, %arg6: memref<128x128xbf16, #tpu.memory_space<vmem>>) attributes {dimension_semantics = [#tpu.dimension_semantics<parallel>], iteration_bounds = array<i64: 2>, scalar_prefetch = 0 : i64, scratch_operands = 0 : i64, tpu.core_type = #tpu.core_type<tc>, window_params = [{transform_indices = @transform_0, window_bounds = array<i64: 128, 32>}, {pipeline_mode = #tpu.pipeline_mode<synchronous>, transform_indices = @transform_1, window_bounds = array<i64: 32, 128>}, {pipeline_mode = #tpu.pipeline_mode<synchronous>, transform_indices = @transform_2, window_bounds = array<i64: 1, 128>}, {pipeline_mode = #tpu.pipeline_mode<synchronous>, transform_indices = @transform_3, window_bounds = array<i64: 128, 128>}, {pipeline_mode = #tpu.pipeline_mode<synchronous>, transform_indices = @transform_4, window_bounds = array<i64: 1, 128>}, {transform_indices = @transform_5, window_bounds = array<i64: 128, 128>}]} {
    %c0 = arith.constant 0 : index
    %c0_0 = arith.constant 0 : index
    %0 = vector.load %arg1[%c0, %c0_0] : memref<128x32xf32, #tpu.memory_space<vmem>>, vector<128x32xf32>
    %1 = arith.truncf %0 : vector<128x32xf32> to vector<128x32xbf16>
    %c0_1 = arith.constant 0 : index
    %c0_2 = arith.constant 0 : index
    %2 = vector.load %arg2[%c0_1, %c0_2] : memref<32x128xbf16, #tpu.memory_space<vmem>>, vector<32x128xbf16>
    %cst = arith.constant dense<0.000000e+00> : vector<128x128xf32>
    %3 = tpu.matmul %1, %2, %cst {dimension_numbers = #tpu.dot_dimension_numbers<[1], [0], [0], [1], [0, 0, 1, 1], [], []>} : vector<128x32xbf16>, vector<32x128xbf16>, vector<128x128xf32> -> vector<128x128xf32>
    %c0_3 = arith.constant 0 : index
    %c0_4 = arith.constant 0 : index
    %4 = vector.load %arg3[%c0_3, %c0_4] : memref<1x128xf32, #tpu.memory_space<vmem>>, vector<1x128xf32>
    %5 = vector.broadcast %4 : vector<1x128xf32> to vector<128x128xf32>
    %6 = arith.addf %3, %5 : vector<128x128xf32>
    %cst_5 = arith.constant 0.000000e+00 : f32
    %7 = vector.broadcast %cst_5 : f32 to vector<128x128xf32>
    %8 = arith.cmpf ogt, %6, %7 : vector<128x128xf32>
    %cst_6 = arith.constant 0.00999999977 : f32
    %9 = vector.broadcast %cst_6 : f32 to vector<128x128xf32>
    %10 = arith.mulf %9, %6 : vector<128x128xf32>
    %11 = arith.select %8, %6, %10 : vector<128x128xi1>, vector<128x128xf32>
    %12 = arith.truncf %11 : vector<128x128xf32> to vector<128x128xbf16>
    %c0_7 = arith.constant 0 : index
    %c0_8 = arith.constant 0 : index
    %13 = vector.load %arg4[%c0_7, %c0_8] : memref<128x128xbf16, #tpu.memory_space<vmem>>, vector<128x128xbf16>
    %cst_9 = arith.constant dense<0.000000e+00> : vector<128x128xf32>
    %14 = tpu.matmul %12, %13, %cst_9 {dimension_numbers = #tpu.dot_dimension_numbers<[1], [0], [0], [1], [0, 0, 1, 1], [], []>} : vector<128x128xbf16>, vector<128x128xbf16>, vector<128x128xf32> -> vector<128x128xf32>
    %c0_10 = arith.constant 0 : index
    %c0_11 = arith.constant 0 : index
    %15 = vector.load %arg5[%c0_10, %c0_11] : memref<1x128xf32, #tpu.memory_space<vmem>>, vector<1x128xf32>
    %16 = vector.broadcast %15 : vector<1x128xf32> to vector<128x128xf32>
    %17 = arith.addf %14, %16 : vector<128x128xf32>
    %18 = arith.truncf %17 : vector<128x128xf32> to vector<128x128xbf16>
    %c0_12 = arith.constant 0 : index
    %c0_13 = arith.constant 0 : index
    %19 = vector.load %arg6[%c0_12, %c0_13] : memref<128x128xbf16, #tpu.memory_space<vmem>>, vector<128x128xbf16>
    tpu.vector_store %arg6[%c0_12, %c0_13], %18 {strides = array<i32>} : memref<128x128xbf16, #tpu.memory_space<vmem>>, vector<128x128xbf16>,
    return
  }
  func.func @transform_0(%arg0: i32) -> (i32, i32) {
    %c0_i32 = arith.constant 0 : i32
    %c0_i32_0 = arith.constant 0 : i32
    return %arg0, %c0_i32 : i32, i32
  }
  func.func @transform_1(%arg0: i32) -> (i32, i32) {
    %c0_i32 = arith.constant 0 : i32
    %c0_i32_0 = arith.constant 0 : i32
    %c0_i32_1 = arith.constant 0 : i32
    return %c0_i32, %c0_i32_0 : i32, i32
  }
  func.func @transform_2(%arg0: i32) -> (i32, i32) {
    %c0_i32 = arith.constant 0 : i32
    %c0_i32_0 = arith.constant 0 : i32
    %c0_i32_1 = arith.constant 0 : i32
    return %c0_i32, %c0_i32_0 : i32, i32
  }
  func.func @transform_3(%arg0: i32) -> (i32, i32) {
    %c0_i32 = arith.constant 0 : i32
    %c0_i32_0 = arith.constant 0 : i32
    %c0_i32_1 = arith.constant 0 : i32
    return %c0_i32, %c0_i32_0 : i32, i32
  }
  func.func @transform_4(%arg0: i32) -> (i32, i32) {
    %c0_i32 = arith.constant 0 : i32
    %c0_i32_0 = arith.constant 0 : i32
    %c0_i32_1 = arith.constant 0 : i32
    return %c0_i32, %c0_i32_0 : i32, i32
  }
  func.func @transform_5(%arg0: i32) -> (i32, i32) {
    %c0_i32 = arith.constant 0 : i32
    %c0_i32_0 = arith.constant 0 : i32
    return %arg0, %c0_i32 : i32, i32
  }
}

</mosaic_0001>

<llo_original>
// kernel: mlp_forward.1
$region0: #{mlp_forward.1}
  #allocation0 [shape = 'u32[]', space=smem, size = 0x4, offset = 0x4, fixed_abs, tag = 'smem constant byte address 0x4 - core index']
  #allocation1 [shape = 'u32[72,128]{1,0:T(1,128)}', space=vmem, size = 0x9000, scoped, tag = 'internal scratch']
  %s0 = inlined_call_operand.vmem [shape: f32[256,32], index: 0, kind: input, shape index: {}]
  %s1 = inlined_call_operand.vmem [shape: bf16[32,128], index: 1, kind: input, shape index: {}]
  %s2 = inlined_call_operand.vmem [shape: f32[1,128], index: 2, kind: input, shape index: {}]
  %s3 = inlined_call_operand.vmem [shape: bf16[128,128], index: 3, kind: input, shape index: {}]
  %s4 = inlined_call_operand.vmem [shape: f32[1,128], index: 4, kind: input, shape index: {}]
  %s5 = inlined_call_operand.vmem [shape: bf16[256,128], index: 5, kind: output, shape index: {}]
  %s6 = sld [smem:[#allocation0]]
  $region53: #{mlp_forward.1} parent=0
    _
  %s8 = ssub.s32 1, %s6
  %s9 = scalar_select 0, %s8, %s6
  loop: start=0, step=1, limit=4
  $region2: #{mlp_forward.1} parent=0 // loop_pre_header
    _
  $region3: #{mlp_forward.1} parent=0 // loop_header
    %s11 = sphi 0, %s15
    %p12 = scmp.ge.s32.totalorder %s11, 4
    %s21 = sphi 0, %s23
    %s24 = sphi 0, %s21
    %s25 = sphi 0, %s24
    %s41 = sphi 0, %s25
    %s45 = sphi 0, %s45
    %s47 = sphi 0, %s45
    %s48 = sphi 0, %s47
    %s62 = sphi 0, %s48
    %s66 = sphi 0, %s66
    %s68 = sphi 0, %s66
    %s69 = sphi 0, %s68
    %s83 = sphi 0, %s69
    %s87 = sphi 0, %s87
    %s89 = sphi 0, %s87
    %s90 = sphi 0, %s89
    %s104 = sphi 0, %s90
    %s108 = sphi 0, %s108
    %s110 = sphi 0, %s108
    %s111 = sphi 0, %s110
    %s125 = sphi 0, %s111
    %s131 = sphi 0, %s133
    %s134 = sphi 0, %s131
    %s135 = sphi 0, %s134
    %s151 = sphi 0, %s135
  $region4: #{mlp_forward.1} parent=0 // loop_header_branch
    %14 = sbr.rel (%p12) target = $region8
  $region5: #{mlp_forward.1} parent=0 // loop_body
    %s16 = ssub.s32 %s11, 1
    %s17 = ssub.s32 %s11, 2
    %s18 = sadd.s32 %s11, 1
    %s19 = ssub.s32 %s11, %s18
    %p20 = scmp.eq.s32.totalorder %s19, 0
    %s22 = sadd.s32 %s21, 1
    %s23 = scalar_select %p20, %s21, %s22
    %p26 = pneg %p20
    %p27 = scmp.eq.s32.totalorder %s11, 1
    %p28 = por %p26, %p27
    %p29 = scmp.ne.s32.totalorder %s21, %s24
    %p30 = scmp.eq.s32.totalorder %s11, 0
    %p31 = por %p29, %p30
    %p32 = scmp.ne.s32.totalorder %s21, %s24
    %p33 = scmp.eq.s32.totalorder %s16, 1
    %p34 = por %p32, %p33
    %p35 = scmp.ne.s32.totalorder %s24, %s25
    %p36 = scmp.eq.s32.totalorder %s16, 0
    %p37 = por %p35, %p36
    %p38 = scmp.ne.s32.totalorder %s24, %s25
    %p39 = scmp.eq.s32.totalorder %s17, 1
    %p40 = por %p38, %p39
    %p42 = scmp.ne.s32.totalorder %s25, %s41
    %p43 = scmp.eq.s32.totalorder %s17, 0
    %p44 = por %p42, %p43
    %s46 = sadd.s32 %s45, 1
    %p49 = scmp.eq.s32.totalorder %s11, 1
    %p50 = scmp.ne.s32.totalorder %s45, %s47
    %p51 = scmp.eq.s32.totalorder %s11, 0
    %p52 = por %p50, %p51
    %p53 = scmp.ne.s32.totalorder %s45, %s47
    %p54 = scmp.eq.s32.totalorder %s16, 1
    %p55 = por %p53, %p54
    %p56 = scmp.ne.s32.totalorder %s47, %s48
    %p57 = scmp.eq.s32.totalorder %s16, 0
    %p58 = por %p56, %p57
    %p59 = scmp.ne.s32.totalorder %s47, %s48
    %p60 = scmp.eq.s32.totalorder %s17, 1
    %p61 = por %p59, %p60
    %p63 = scmp.ne.s32.totalorder %s48, %s62
    %p64 = scmp.eq.s32.totalorder %s17, 0
    %p65 = por %p63, %p64
    %s67 = sadd.s32 %s66, 1
    %p70 = scmp.eq.s32.totalorder %s11, 1
    %p71 = scmp.ne.s32.totalorder %s66, %s68
    %p72 = scmp.eq.s32.totalorder %s11, 0
    %p73 = por %p71, %p72
    %p74 = scmp.ne.s32.totalorder %s66, %s68
    %p75 = scmp.eq.s32.totalorder %s16, 1
    %p76 = por %p74, %p75
    %p77 = scmp.ne.s32.totalorder %s68, %s69
    %p78 = scmp.eq.s32.totalorder %s16, 0
    %p79 = por %p77, %p78
    %p80 = scmp.ne.s32.totalorder %s68, %s69
    %p81 = scmp.eq.s32.totalorder %s17, 1
    %p82 = por %p80, %p81
    %p84 = scmp.ne.s32.totalorder %s69, %s83
    %p85 = scmp.eq.s32.totalorder %s17, 0
    %p86 = por %p84, %p85
    %s88 = sadd.s32 %s87, 1
    %p91 = scmp.eq.s32.totalorder %s11, 1
    %p92 = scmp.ne.s32.totalorder %s87, %s89
    %p93 = scmp.eq.s32.totalorder %s11, 0
    %p94 = por %p92, %p93
    %p95 = scmp.ne.s32.totalorder %s87, %s89
    %p96 = scmp.eq.s32.totalorder %s16, 1
    %p97 = por %p95, %p96
    %p98 = scmp.ne.s32.totalorder %s89, %s90
    %p99 = scmp.eq.s32.totalorder %s16, 0
    %p100 = por %p98, %p99
    %p101 = scmp.ne.s32.totalorder %s89, %s90
    %p102 = scmp.eq.s32.totalorder %s17, 1
    %p103 = por %p101, %p102
    %p105 = scmp.ne.s32.totalorder %s90, %s104
    %p106 = scmp.eq.s32.totalorder %s17, 0
    %p107 = por %p105, %p106
    %s109 = sadd.s32 %s108, 1
    %p112 = scmp.eq.s32.totalorder %s11, 1
    %p113 = scmp.ne.s32.totalorder %s108, %s110
    %p114 = scmp.eq.s32.totalorder %s11, 0
    %p115 = por %p113, %p114
    %p116 = scmp.ne.s32.totalorder %s108, %s110
    %p117 = scmp.eq.s32.totalorder %s16, 1
    %p118 = por %p116, %p117
    %p119 = scmp.ne.s32.totalorder %s110, %s111
    %p120 = scmp.eq.s32.totalorder %s16, 0
    %p121 = por %p119, %p120
    %p122 = scmp.ne.s32.totalorder %s110, %s111
    %p123 = scmp.eq.s32.totalorder %s17, 1
    %p124 = por %p122, %p123
    %p126 = scmp.ne.s32.totalorder %s111, %s125
    %p127 = scmp.eq.s32.totalorder %s17, 0
    %p128 = por %p126, %p127
    %s129 = ssub.s32 %s11, %s18
    %p130 = scmp.eq.s32.totalorder %s129, 0
    %s132 = sadd.s32 %s131, 1
    %s133 = scalar_select %p130, %s131, %s132
    %p136 = pneg %p130
    %p137 = scmp.eq.s32.totalorder %s11, 1
    %p138 = por %p136, %p137
    %p139 = scmp.ne.s32.totalorder %s131, %s134
    %p140 = scmp.eq.s32.totalorder %s11, 0
    %p141 = por %p139, %p140
    %p142 = scmp.ne.s32.totalorder %s131, %s134
    %p143 = scmp.eq.s32.totalorder %s16, 1
    %p144 = por %p142, %p143
    %p145 = scmp.ne.s32.totalorder %s134, %s135
    %p146 = scmp.eq.s32.totalorder %s16, 0
    %p147 = por %p145, %p146
    %p148 = scmp.ne.s32.totalorder %s134, %s135
    %p149 = scmp.eq.s32.totalorder %s17, 1
    %p150 = por %p148, %p149
    %p152 = scmp.ne.s32.totalorder %s135, %s151
    %p153 = scmp.eq.s32.totalorder %s17, 0
    %p154 = por %p152, %p153
    %p155 = scmp.le.s32.totalorder 1, %s11
    %p156 = scmp.lt.s32.totalorder %s11, 3
    %p157 = pnand %p155, %p156
    %p158 = pneg %p157
    // Predicated region
    $region9: #{mlp_forward.1} parent=5 // pred_check
      _
    $region10: #{mlp_forward.1} parent=5 // pred_check_branch
      %160 = sbr.rel (%p157) target = $region12
    $region11: #{mlp_forward.1} parent=5 // pred_region
      %s161 = ssub.s32 %s11, 1
      // Predicated region
      $region13: #{mlp_forward.1} parent=11 // pred_check
        %p162 = pneg %p58
      $region14: #{mlp_forward.1} parent=11 // pred_check_branch
        %164 = sbr.rel (%p162) target = $region16
      $region15: #{mlp_forward.1} parent=11 // pred_region
        _
      $region16: #{mlp_forward.1} parent=11 // pred_fallthru
        _
      // Predicated region
      $region17: #{mlp_forward.1} parent=11 // pred_check
        %p165 = pneg %p79
      $region18: #{mlp_forward.1} parent=11 // pred_check_branch
        %167 = sbr.rel (%p165) target = $region20
      $region19: #{mlp_forward.1} parent=11 // pred_region
        _
      $region20: #{mlp_forward.1} parent=11 // pred_fallthru
        _
      // Predicated region
      $region21: #{mlp_forward.1} parent=11 // pred_check
        %p168 = pneg %p100
      $region22: #{mlp_forward.1} parent=11 // pred_check_branch
        %170 = sbr.rel (%p168) target = $region24
      $region23: #{mlp_forward.1} parent=11 // pred_region
        _
      $region24: #{mlp_forward.1} parent=11 // pred_fallthru
        _
      // Predicated region
      $region25: #{mlp_forward.1} parent=11 // pred_check
        %p171 = pneg %p121
      $region26: #{mlp_forward.1} parent=11 // pred_check_branch
        %173 = sbr.rel (%p171) target = $region28
      $region27: #{mlp_forward.1} parent=11 // pred_region
        _
      $region28: #{mlp_forward.1} parent=11 // pred_fallthru
        _
    $region12: #{mlp_forward.1} parent=5 // pred_fallthru
      _
    %p174 = scmp.lt.s32.totalorder %s11, 2
    // Predicated region
    $region29: #{mlp_forward.1} parent=5 // pred_check
      %p175 = pneg %p174
    $region30: #{mlp_forward.1} parent=5 // pred_check_branch
      %177 = sbr.rel (%p175) target = $region32
    $region31: #{mlp_forward.1} parent=5 // pred_region
      // Predicated region
      $region33: #{mlp_forward.1} parent=31 // pred_check
        %p178 = pneg %p31
      $region34: #{mlp_forward.1} parent=31 // pred_check_branch
        %180 = sbr.rel (%p178) target = $region36
      $region35: #{mlp_forward.1} parent=31 // pred_region
        %s181 = smul.u32 16, %s11
        %p182 = scmp.lt.s32.totalorder %s181, 31
        %s183 = scalar_select %p182, %s181, 31
        %s184 = smul.addr %s183, 8
        %s185 = scalar_lea.vmem %s0, %s184
        %s186 = smul.u32 16, %s11
      $region36: #{mlp_forward.1} parent=31 // pred_fallthru
        _
    $region32: #{mlp_forward.1} parent=5 // pred_fallthru
      _
    %p187 = scmp.le.s32.totalorder 1, %s11
    %p188 = scmp.lt.s32.totalorder %s11, 3
    %p189 = pnand %p187, %p188
    %p190 = pneg %p189
    // Predicated region
    $region37: #{mlp_forward.1} parent=5 // pred_check
      _
    $region38: #{mlp_forward.1} parent=5 // pred_check_branch
      %192 = sbr.rel (%p189) target = $region40
    $region39: #{mlp_forward.1} parent=5 // pred_region
      %s193 = ssub.s32 %s11, 1
      %s194 = smul.u32 16, %s16
      %p195 = scmp.lt.s32.totalorder %s194, 31
      %s196 = scalar_select %p195, %s194, 31
      %s197 = smul.addr %s196, 8
      %s198 = scalar_lea.vmem %s0, %s197
      %p199 = pneg %p37
      %p200 = pneg %p34
      %p201 = pneg %p58
      %p202 = pneg %p55
      %p203 = pneg %p79
      %p204 = pneg %p76
      %p205 = pneg %p100
      %p206 = pneg %p97
      %p207 = pneg %p121
      %p208 = pneg %p118
      %p209 = pneg %p147
      %p210 = pneg %p144
      %s211 = smul.u32 16, %s16
      %p212 = scmp.lt.s32.totalorder %s211, 31
      %s213 = scalar_select %p212, %s211, 31
      %s214 = smul.addr %s213, 4
      %s215 = scalar_lea.vmem %s5, %s214
      %s216 = smul.u32 16, %s16
      %p217 = scmp.lt.s32.totalorder %s216, 31
      %s218 = scalar_select %p217, %s216, 31
      %s219 = smul.addr %s218, 8
      %s220 = scalar_lea.vmem %s0, %s219
      %s221 = smul.u32 16, %s16
      %s222 = smul.u32 16, %s16
      %p223 = scmp.lt.s32.totalorder %s222, 31
      %s224 = scalar_select %p223, %s222, 31
      %s225 = smul.addr %s224, 4
      %s226 = scalar_lea.vmem %s5, %s225
      %s227 = smul.u32 16, %s16
      %v229 = vld [vmem:[%s220] sm:$0xff]
      %v230 = vld [vmem:[%s220 + $0x8] sm:$0xff]
      %v231 = vld [vmem:[%s220 + $0x10] sm:$0xff]
      %v232 = vld [vmem:[%s220 + $0x18] sm:$0xff]
      %v233 = vld [vmem:[%s220 + $0x20] sm:$0xff]
      %v234 = vld [vmem:[%s220 + $0x28] sm:$0xff]
      %v235 = vld [vmem:[%s220 + $0x30] sm:$0xff]
      %v236 = vld [vmem:[%s220 + $0x38] sm:$0xff]
      %v237 = vld [vmem:[%s220 + $0x40] sm:$0xff]
      %v238 = vld [vmem:[%s220 + $0x48] sm:$0xff]
      %v239 = vld [vmem:[%s220 + $0x50] sm:$0xff]
      %v240 = vld [vmem:[%s220 + $0x58] sm:$0xff]
      %v241 = vld [vmem:[%s220 + $0x60] sm:$0xff]
      %v242 = vld [vmem:[%s220 + $0x68] sm:$0xff]
      %v243 = vld [vmem:[%s220 + $0x70] sm:$0xff]
      %v244 = vld [vmem:[%s220 + $0x78] sm:$0xff]
      %v245 = vpack.c.bf16 %v230, %v229
      %v246 = vpack.c.bf16 %v232, %v231
      %v247 = vpack.c.bf16 %v234, %v233
      %v248 = vpack.c.bf16 %v236, %v235
      %v249 = vpack.c.bf16 %v238, %v237
      %v250 = vpack.c.bf16 %v240, %v239
      %v251 = vpack.c.bf16 %v242, %v241
      %v252 = vpack.c.bf16 %v244, %v243
      %v253 = vld [vmem:[%s1] sm:$0xf]
      %v254 = vld [vmem:[%s1 + $0x4] sm:$0xf]
      %v255 = vld [vmem:[%s1 + $0x8] sm:$0xf]
      %v256 = vld [vmem:[%s1 + $0xc] sm:$0xf]
      %v257 = vld [vmem:[%s2] sm:$0x1]
      %v259 = vperm.slane %v257, 0
      %v265 = vunpack.c.l.b16 %v253
      %v266 = vunpack.c.l.b16 %v254
      %v267 = vunpack.c.l.b16 %v255
      %v268 = vunpack.c.l.b16 %v256
      %v269 = vpack.c.b16 %v266, %v265
      %v270 = vpack.c.b16 %v268, %v267
      %vm273 = vcmask 261120
      %v275 = vsel %vm273, %v245, 0
      %v278 = vsel %vm273, %v246, 0
      %v281 = vsel %vm273, %v247, 0
      %v284 = vsel %vm273, %v248, 0
      %v287 = vsel %vm273, %v249, 0
      %v290 = vsel %vm273, %v250, 0
      %v293 = vsel %vm273, %v251, 0
      %v296 = vsel %vm273, %v252, 0
      %298 = vmatpush.bf16.msra.mxu0 0
      %299 = vmatpush.bf16.msra.mxu0 0
      %300 = vmatpush.bf16.msra.mxu0 0
      %301 = vmatpush.bf16.msra.mxu0 0
      %302 = vmatpush.bf16.msra.mxu0 0
      %303 = vmatpush.bf16.msra.mxu0 0
      %304 = vmatpush.bf16.msra.mxu0 %v270
      %305 = vmatpush.bf16.msra.mxu0 %v269
      %306 = vmatmul.bf16.gmra.mxu0 %v275
      %v307 = vpop.f32.mrf.mxu0
      %v308 = vadd.f32 %v259, %v307
      %v309 = vpop.f32.mrf.mxu0
      %v310 = vadd.f32 %v259, %v309
      %311 = vmatmul.bf16.gmra.mxu0 %v278
      %v312 = vpop.f32.mrf.mxu0
      %v313 = vadd.f32 %v259, %v312
      %v314 = vpop.f32.mrf.mxu0
      %v315 = vadd.f32 %v259, %v314
      %316 = vmatmul.bf16.gmra.mxu0 %v281
      %v317 = vpop.f32.mrf.mxu0
      %v318 = vadd.f32 %v259, %v317
      %v319 = vpop.f32.mrf.mxu0
      %v320 = vadd.f32 %v259, %v319
      %321 = vmatmul.bf16.gmra.mxu0 %v284
      %v322 = vpop.f32.mrf.mxu0
      %v323 = vadd.f32 %v259, %v322
      %v324 = vpop.f32.mrf.mxu0
      %v325 = vadd.f32 %v259, %v324
      %326 = vmatmul.bf16.gmra.mxu0 %v287
      %v327 = vpop.f32.mrf.mxu0
      %v328 = vadd.f32 %v259, %v327
      %v329 = vpop.f32.mrf.mxu0
      %v330 = vadd.f32 %v259, %v329
      %331 = vmatmul.bf16.gmra.mxu0 %v290
      %v332 = vpop.f32.mrf.mxu0
      %v333 = vadd.f32 %v259, %v332
      %v334 = vpop.f32.mrf.mxu0
      %v335 = vadd.f32 %v259, %v334
      %336 = vmatmul.bf16.gmra.mxu0 %v293
      %v337 = vpop.f32.mrf.mxu0
      %v338 = vadd.f32 %v259, %v337
      %v339 = vpop.f32.mrf.mxu0
      %v340 = vadd.f32 %v259, %v339
      %341 = vmatmul.bf16.gmra.mxu0 %v296
      %v342 = vpop.f32.mrf.mxu0
      %v343 = vadd.f32 %v259, %v342
      %v344 = vpop.f32.mrf.mxu0
      %v345 = vadd.f32 %v259, %v344
      %346 = vdwg.mxu0
      %vm347 = vcmp.gt.f32.partialorder %v308, 0.0
      %vm348 = vcmp.gt.f32.partialorder %v310, 0.0
      %vm349 = vcmp.gt.f32.partialorder %v313, 0.0
      %vm350 = vcmp.gt.f32.partialorder %v315, 0.0
      %vm351 = vcmp.gt.f32.partialorder %v318, 0.0
      %vm352 = vcmp.gt.f32.partialorder %v320, 0.0
      %vm353 = vcmp.gt.f32.partialorder %v323, 0.0
      %vm354 = vcmp.gt.f32.partialorder %v325, 0.0
      %vm355 = vcmp.gt.f32.partialorder %v328, 0.0
      %vm356 = vcmp.gt.f32.partialorder %v330, 0.0
      %vm357 = vcmp.gt.f32.partialorder %v333, 0.0
      %vm358 = vcmp.gt.f32.partialorder %v335, 0.0
      %vm359 = vcmp.gt.f32.partialorder %v338, 0.0
      %vm360 = vcmp.gt.f32.partialorder %v340, 0.0
      %vm361 = vcmp.gt.f32.partialorder %v343, 0.0
      %vm362 = vcmp.gt.f32.partialorder %v345, 0.0
      %v363 = vmul.f32 %v308, 0.01
      %v364 = vmul.f32 %v310, 0.01
      %v365 = vmul.f32 %v313, 0.01
      %v366 = vmul.f32 %v315, 0.01
      %v367 = vmul.f32 %v318, 0.01
      %v368 = vmul.f32 %v320, 0.01
      %v369 = vmul.f32 %v323, 0.01
      %v370 = vmul.f32 %v325, 0.01
      %v371 = vmul.f32 %v328, 0.01
      %v372 = vmul.f32 %v330, 0.01
      %v373 = vmul.f32 %v333, 0.01
      %v374 = vmul.f32 %v335, 0.01
      %v375 = vmul.f32 %v338, 0.01
      %v376 = vmul.f32 %v340, 0.01
      %v377 = vmul.f32 %v343, 0.01
      %v378 = vmul.f32 %v345, 0.01
      %v379 = vsel %vm347, %v308, %v363
      %v380 = vsel %vm348, %v310, %v364
      %v381 = vsel %vm349, %v313, %v365
      %v382 = vsel %vm350, %v315, %v366
      %v383 = vsel %vm351, %v318, %v367
      %v384 = vsel %vm352, %v320, %v368
      %v385 = vsel %vm353, %v323, %v369
      %v386 = vsel %vm354, %v325, %v370
      %v387 = vsel %vm355, %v328, %v371
      %v388 = vsel %vm356, %v330, %v372
      %v389 = vsel %vm357, %v333, %v373
      %v390 = vsel %vm358, %v335, %v374
      %v391 = vsel %vm359, %v338, %v375
      %v392 = vsel %vm360, %v340, %v376
      %v393 = vsel %vm361, %v343, %v377
      %v394 = vsel %vm362, %v345, %v378
      %v395 = vpack.c.bf16 %v380, %v379
      %v396 = vpack.c.bf16 %v382, %v381
      %v397 = vpack.c.bf16 %v384, %v383
      %v398 = vpack.c.bf16 %v386, %v385
      %v399 = vpack.c.bf16 %v388, %v387
      %v400 = vpack.c.bf16 %v390, %v389
      %v401 = vpack.c.bf16 %v392, %v391
      %v402 = vpack.c.bf16 %v394, %v393
      %v403 = vld [vmem:[%s3] sm:$0xf]
      %v404 = vld [vmem:[%s3 + $0x4] sm:$0xf]
      %v405 = vld [vmem:[%s3 + $0x8] sm:$0xf]
      %v406 = vld [vmem:[%s3 + $0xc] sm:$0xf]
      %v407 = vld [vmem:[%s3 + $0x10] sm:$0xf]
      %v408 = vld [vmem:[%s3 + $0x14] sm:$0xf]
      %v409 = vld [vmem:[%s3 + $0x18] sm:$0xf]
      %v410 = vld [vmem:[%s3 + $0x1c] sm:$0xf]
      %v411 = vld [vmem:[%s3 + $0x20] sm:$0xf]
      %v412 = vld [vmem:[%s3 + $0x24] sm:$0xf]
      %v413 = vld [vmem:[%s3 + $0x28] sm:$0xf]
      %v414 = vld [vmem:[%s3 + $0x2c] sm:$0xf]
      %v415 = vld [vmem:[%s3 + $0x30] sm:$0xf]
      %v416 = vld [vmem:[%s3 + $0x34] sm:$0xf]
      %v417 = vld [vmem:[%s3 + $0x38] sm:$0xf]
      %v418 = vld [vmem:[%s3 + $0x3c] sm:$0xf]
      %v419 = vld [vmem:[%s4] sm:$0x1]
      %v421 = vperm.slane %v419, 0
      %v439 = vunpack.c.l.b16 %v403
      %v440 = vunpack.c.l.b16 %v404
      %v441 = vunpack.c.l.b16 %v405
      %v442 = vunpack.c.l.b16 %v406
      %v443 = vunpack.c.l.b16 %v407
      %v444 = vunpack.c.l.b16 %v408
      %v445 = vunpack.c.l.b16 %v409
      %v446 = vunpack.c.l.b16 %v410
      %v447 = vunpack.c.l.b16 %v411
      %v448 = vunpack.c.l.b16 %v412
      %v449 = vunpack.c.l.b16 %v413
      %v450 = vunpack.c.l.b16 %v414
      %v451 = vunpack.c.l.b16 %v415
      %v452 = vunpack.c.l.b16 %v416
      %v453 = vunpack.c.l.b16 %v417
      %v454 = vunpack.c.l.b16 %v418
      %v455 = vpack.c.b16 %v440, %v439
      %v456 = vpack.c.b16 %v442, %v441
      %v457 = vpack.c.b16 %v444, %v443
      %v458 = vpack.c.b16 %v446, %v445
      %v459 = vpack.c.b16 %v448, %v447
      %v460 = vpack.c.b16 %v450, %v449
      %v461 = vpack.c.b16 %v452, %v451
      %v462 = vpack.c.b16 %v454, %v453
      %471 = vmatpush.bf16.msra.mxu0 %v462
      %472 = vmatpush.bf16.msra.mxu0 %v461
      %473 = vmatpush.bf16.msra.mxu0 %v460
      %474 = vmatpush.bf16.msra.mxu0 %v459
      %475 = vmatpush.bf16.msra.mxu0 %v458
      %476 = vmatpush.bf16.msra.mxu0 %v457
      %477 = vmatpush.bf16.msra.mxu0 %v456
      %478 = vmatpush.bf16.msra.mxu0 %v455
      %479 = vmatmul.bf16.gmra.mxu0 %v395
      %v480 = vpop.f32.mrf.mxu0
      %v481 = vadd.f32 %v421, %v480
      %v482 = vpop.f32.mrf.mxu0
      %v483 = vadd.f32 %v421, %v482
      %484 = vmatmul.bf16.gmra.mxu0 %v396
      %v485 = vpop.f32.mrf.mxu0
      %v486 = vadd.f32 %v421, %v485
      %v487 = vpop.f32.mrf.mxu0
      %v488 = vadd.f32 %v421, %v487
      %489 = vmatmul.bf16.gmra.mxu0 %v397
      %v490 = vpop.f32.mrf.mxu0
      %v491 = vadd.f32 %v421, %v490
      %v492 = vpop.f32.mrf.mxu0
      %v493 = vadd.f32 %v421, %v492
      %494 = vmatmul.bf16.gmra.mxu0 %v398
      %v495 = vpop.f32.mrf.mxu0
      %v496 = vadd.f32 %v421, %v495
      %v497 = vpop.f32.mrf.mxu0
      %v498 = vadd.f32 %v421, %v497
      %499 = vmatmul.bf16.gmra.mxu0 %v399
      %v500 = vpop.f32.mrf.mxu0
      %v501 = vadd.f32 %v421, %v500
      %v502 = vpop.f32.mrf.mxu0
      %v503 = vadd.f32 %v421, %v502
      %504 = vmatmul.bf16.gmra.mxu0 %v400
      %v505 = vpop.f32.mrf.mxu0
      %v506 = vadd.f32 %v421, %v505
      %v507 = vpop.f32.mrf.mxu0
      %v508 = vadd.f32 %v421, %v507
      %509 = vmatmul.bf16.gmra.mxu0 %v401
      %v510 = vpop.f32.mrf.mxu0
      %v511 = vadd.f32 %v421, %v510
      %v512 = vpop.f32.mrf.mxu0
      %v513 = vadd.f32 %v421, %v512
      %514 = vmatmul.bf16.gmra.mxu0 %v402
      %v515 = vpop.f32.mrf.mxu0
      %v516 = vadd.f32 %v421, %v515
      %v517 = vpop.f32.mrf.mxu0
      %v518 = vadd.f32 %v421, %v517
      %519 = vdwg.mxu0
      %v520 = vpack.c.bf16 %v481, %v481
      %v521 = vpack.c.bf16 %v483, %v483
      %v522 = vpack.c.bf16 %v486, %v486
      %v523 = vpack.c.bf16 %v488, %v488
      %v524 = vpack.c.bf16 %v491, %v491
      %v525 = vpack.c.bf16 %v493, %v493
      %v526 = vpack.c.bf16 %v496, %v496
      %v527 = vpack.c.bf16 %v498, %v498
      %v528 = vpack.c.bf16 %v501, %v501
      %v529 = vpack.c.bf16 %v503, %v503
      %v530 = vpack.c.bf16 %v506, %v506
      %v531 = vpack.c.bf16 %v508, %v508
      %v532 = vpack.c.bf16 %v511, %v511
      %v533 = vpack.c.bf16 %v513, %v513
      %v534 = vpack.c.bf16 %v516, %v516
      %v535 = vpack.c.bf16 %v518, %v518
      %536 = vst [vmem:[%s226] sm:$0xf] %v520
      %537 = vst [vmem:[%s226 + $0x4] sm:$0xf] %v521
      %538 = vst [vmem:[%s226 + $0x8] sm:$0xf] %v522
      %539 = vst [vmem:[%s226 + $0xc] sm:$0xf] %v523
      %540 = vst [vmem:[%s226 + $0x10] sm:$0xf] %v524
      %541 = vst [vmem:[%s226 + $0x14] sm:$0xf] %v525
      %542 = vst [vmem:[%s226 + $0x18] sm:$0xf] %v526
      %543 = vst [vmem:[%s226 + $0x1c] sm:$0xf] %v527
      %544 = vst [vmem:[%s226 + $0x20] sm:$0xf] %v528
      %545 = vst [vmem:[%s226 + $0x24] sm:$0xf] %v529
      %546 = vst [vmem:[%s226 + $0x28] sm:$0xf] %v530
      %547 = vst [vmem:[%s226 + $0x2c] sm:$0xf] %v531
      %548 = vst [vmem:[%s226 + $0x30] sm:$0xf] %v532
      %549 = vst [vmem:[%s226 + $0x34] sm:$0xf] %v533
      %550 = vst [vmem:[%s226 + $0x38] sm:$0xf] %v534
      %551 = vst [vmem:[%s226 + $0x3c] sm:$0xf] %v535
      %s552 = smul.u32 16, %s16
      %p553 = scmp.lt.s32.totalorder %s552, 31
      %s554 = scalar_select %p553, %s552, 31
      %s555 = smul.addr %s554, 4
      %s556 = scalar_lea.vmem %s5, %s555
      // Predicated region
      $region41: #{mlp_forward.1} parent=39 // pred_check
        %p557 = pneg %p144
      $region42: #{mlp_forward.1} parent=39 // pred_check_branch
        %559 = sbr.rel (%p557) target = $region44
      $region43: #{mlp_forward.1} parent=39 // pred_region
        %s560 = smul.u32 16, %s16
      $region44: #{mlp_forward.1} parent=39 // pred_fallthru
        _
    $region40: #{mlp_forward.1} parent=5 // pred_fallthru
      _
    %p561 = scmp.le.s32.totalorder 2, %s11
    // Predicated region
    $region45: #{mlp_forward.1} parent=5 // pred_check
      %p562 = pneg %p561
    $region46: #{mlp_forward.1} parent=5 // pred_check_branch
      %564 = sbr.rel (%p562) target = $region48
    $region47: #{mlp_forward.1} parent=5 // pred_region
      %s565 = ssub.s32 %s11, 2
      // Predicated region
      $region49: #{mlp_forward.1} parent=47 // pred_check
        %p566 = pneg %p150
      $region50: #{mlp_forward.1} parent=47 // pred_check_branch
        %568 = sbr.rel (%p566) target = $region52
      $region51: #{mlp_forward.1} parent=47 // pred_region
        %s569 = smul.u32 16, %s17
        %p570 = scmp.lt.s32.totalorder %s569, 31
        %s571 = scalar_select %p570, %s569, 31
        %s572 = smul.addr %s571, 4
        %s573 = scalar_lea.vmem %s5, %s572
      $region52: #{mlp_forward.1} parent=47 // pred_fallthru
        _
    $region48: #{mlp_forward.1} parent=5 // pred_fallthru
      _
  $region6: #{mlp_forward.1} parent=0 // loop_footer
    %s15 = sadd.s32 1, %s11
  $region7: #{mlp_forward.1} parent=0 // loop_footer_branch
    %10 = sbr.rel target = $region3
  $region8: #{mlp_forward.1} parent=0 // loop_exit
    _

</llo_original>
